<compile_context>
chip_gen: v7x
topology: tpu7x:2x2x1
jax: 0.10.0
libtpu: 0.0.40
codegen_flags: <defaults>
</compile_context>

<pallas_src>
import jax
import jax.numpy as jnp
from jax.experimental import pallas as pl
from jax.experimental.pallas import tpu as pltpu


def _make_branching_kernel(batch_size: int):
    """Return a kernel specialized on the (static) batch size.

    The Python `if` chain below is resolved at trace time, so the emitted
    kernel is just constant scalar stores (batch in {1,2,3}) or a single
    scalar copy + constant store (any other batch).
    """

    def kernel(cache_in_ref, out_ref):
        # cache_in_ref: (1,) int32 in SMEM -- current cache buffer value
        # out_ref:      (2,) int32 in SMEM -- [new_cache, output]
        if batch_size == 3:
            out_ref[0] = jnp.int32(3)
            out_ref[1] = jnp.int32(3)
        elif batch_size == 2:
            out_ref[0] = jnp.int32(2)
            out_ref[1] = jnp.int32(2)
        elif batch_size == 1:
            out_ref[0] = jnp.int32(1)
            out_ref[1] = jnp.int32(1)
        else:
            out_ref[0] = cache_in_ref[0]   # cache unchanged
            out_ref[1] = jnp.int32(0)      # torch.tensor(0)

    return kernel


@jax.jit
def branching_model_forward(x: jax.Array, cache: jax.Array):
    """JAX/Pallas equivalent of BranchingModel.forward.

    x:      any array; only its leading (batch) dimension matters (NCHW-like).
    cache:  scalar int32 'buffer' (the stateful buffer is threaded explicitly).
    Returns (new_cache, output) as int32 scalars.
    """
    batch_size = x.shape[0]  # static under jit -> specializes the kernel
    cache_in = jnp.asarray(cache, dtype=jnp.int32).reshape((1,))

    packed = pl.pallas_call(
        _make_branching_kernel(batch_size),
        out_shape=jax.ShapeDtypeStruct((2,), jnp.int32),
        in_specs=[pl.BlockSpec(memory_space=pltpu.MemorySpace.SMEM)],
        out_specs=pl.BlockSpec(memory_space=pltpu.MemorySpace.SMEM),
        cost_estimate=pl.CostEstimate(
            flops=0, transcendentals=0, bytes_accessed=16),
    )(cache_in)

    return packed[0], packed[1]


def _reference(batch_size: int, cache: int):
    """Pure-python reference of the PyTorch semantics."""
    out = 0
    if batch_size == 1:
        cache, out = 1, 1
    if batch_size == 2:
        cache, out = 2, 2
    if batch_size == 3:
        cache, out = 3, 3
    return cache, out


if __name__ == "__main__":
    key = jax.random.PRNGKey(0)

    # Buffer initial value (self.cache = tensor(-1)).
    cache0 = jnp.int32(-1)

    ok = True
    # Check several batch sizes, including the requested small shape (2,4,16,16).
    for batch in (1, 2, 3, 4):
        x = jax.random.normal(key, (batch, 4, 16, 16), dtype=jnp.float32)
        new_cache, output = branching_model_forward(x, cache0)
        new_cache = jax.block_until_ready(new_cache)
        output = jax.block_until_ready(output)
        ref_cache, ref_out = _reference(batch, int(cache0))
        if int(new_cache) != ref_cache or int(output) != ref_out:
            ok = False
            print(f"MISMATCH batch={batch}: got ({int(new_cache)}, {int(output)}), "
                  f"want ({ref_cache}, {ref_out})")

    if ok:
        print("KERNEL_OK")
</pallas_src>

<mosaic_0001>
module attributes {stable_mosaic.version = 11 : i64} {
  func.func @kernel(%arg0: memref<1xi32, #tpu.memory_space<smem>>, %arg1: memref<2xi32, #tpu.memory_space<smem>>) attributes {dimension_semantics = [], scalar_prefetch = 0 : i64, scratch_operands = 0 : i64, tpu.core_type = #tpu.core_type<tc>} {
    %c1_i32 = arith.constant 1 : i32
    %c0 = arith.constant 0 : index
    %0 = memref.load %arg1[%c0] : memref<2xi32, #tpu.memory_space<smem>>
    memref.store %c1_i32, %arg1[%c0] : memref<2xi32, #tpu.memory_space<smem>>
    %c1_i32_0 = arith.constant 1 : i32
    %c1 = arith.constant 1 : index
    %1 = memref.load %arg1[%c1] : memref<2xi32, #tpu.memory_space<smem>>
    memref.store %c1_i32_0, %arg1[%c1] : memref<2xi32, #tpu.memory_space<smem>>
    return
  }
}

</mosaic_0001>

<llo_original>
// kernel: branching_model_forward.1
$region0: #{branching_model_forward.1}
  #allocation0 [shape = 'u32[]', space=smem, size = 0x4, offset = 0x4, fixed_abs, tag = 'smem constant byte address 0x4 - core index']
  #allocation1 [shape = 'u32[144,128]{1,0:T(1,128)}', space=vmem, size = 0x12000, scoped, tag = 'internal scratch']
  #allocation2 [shape = 's32[1]{0:T(128)S(6)}', space=smem, size = 0x200, scoped, tag = 'scoped memory for branching_model_forward.1']
  %s0 = inlined_call_operand.<no memory space> [shape: s32[1], index: 0, kind: input, shape index: {}]
  %s1 = inlined_call_operand.vmem [shape: s32[2], index: 1, kind: output, shape index: {}]
  %s2 = sld [smem:[#allocation0]]
  $region14: #{branching_model_forward.1} parent=0
    _
  %s4 = ssub.s32 1, %s2
  %s5 = scalar_select 0, %s4, %s2
  %6 = sst [smem:[#allocation2]] %s0
  $region1: #{branching_model_forward.1} parent=0
    #allocation3 [shape = 'u8[512]{0}', space=smem, size = 0x200, scoped, tag = 'output window, operand 0, single buffered']
    #allocation4 [shape = 's32[1]{0}', space=sflag, size = 0x4, scoped, tag = 'scoped memory for branching_model_forward.1']
    %7 = vsyncpa [#allocation4], 0
    // Predicated region
    $region2: #{branching_model_forward.1} parent=1 // pred_check
      _
    $region3: #{branching_model_forward.1} parent=1 // pred_check_branch
      %9 = sbr.rel (0) target = $region5
    $region4: #{branching_model_forward.1} parent=1 // pred_region
      _
    $region5: #{branching_model_forward.1} parent=1 // pred_fallthru
      _
    %s10 = scalar_lea.smem [#allocation3], 0
    %11 = sst [smem:[%s10]] 1
    %s12 = scalar_lea.smem [#allocation3], 1
    %13 = sst [smem:[%s12]] 1
    // Predicated region
    $region6: #{branching_model_forward.1} parent=1 // pred_check
      _
    $region7: #{branching_model_forward.1} parent=1 // pred_check_branch
      %15 = sbr.rel (0) target = $region9
    $region8: #{branching_model_forward.1} parent=1 // pred_region
      %s17 = ssub.s32 16, 16
      %18 = vsyncadd [#allocation4], %s17
      %s20 = sshll.u32 %s1, 4
      %s21 = int_to_ptr.vmem [resolvable:$true] %s20
      %23 = dma.smem_to_vmem [#allocation3], 16, %s21, [#allocation4]
    $region9: #{branching_model_forward.1} parent=1 // pred_fallthru
      _
    // Predicated region
    $region10: #{branching_model_forward.1} parent=1 // pred_check
      _
    $region11: #{branching_model_forward.1} parent=1 // pred_check_branch
      %25 = sbr.rel (0) target = $region13
    $region12: #{branching_model_forward.1} parent=1 // pred_region
      %26 = dma.done [#allocation4], 16
    $region13: #{branching_model_forward.1} parent=1 // pred_fallthru
      _
    %27 = sfence
    %28 = vsyncpa [#allocation4], 1

</llo_original>
